<compile_context>
chip_gen: v7x
topology: tpu7x:2x2x1
jax: 0.10.0
libtpu: 0.0.40
codegen_flags: <defaults>
</compile_context>

<pallas_src>
import jax
import jax.numpy as jnp
from jax.experimental import pallas as pl
from jax.experimental.pallas import tpu as pltpu


def _round_up(x, m):
    return ((x + m - 1) // m) * m


def _default_pack():
    """MXU-width-matched batch-pack factor: 4 on v6e/v7x (256-wide MXU), 2 otherwise."""
    try:
        kind = jax.devices()[0].device_kind.lower()
    except Exception:
        return 2
    if "v6" in kind or "v7" in kind or "7x" in kind:
        return 4
    return 2


def _vmem_capacity_bytes():
    try:
        return int(pltpu.get_tpu_info().vmem_capacity_bytes)
    except Exception:
        return 64 << 20  # v7x per-core VMEM -- the smallest of v5e/v6e/v7x


def _mlp_kernel(x_ref, w1_ref, b1_ref, w2_ref, b2_ref, w3_ref, b3_ref, o_ref):
    # x_ref : (TR, pack*F) native dtype     | w1_ref: (pack*F, pack*H) bf16
    # w2_ref: (pack*H, pack*H) bf16          | w3_ref: (pack*H, pack)   bf16
    # b1/b2 : (1, pack*H) f32 | b3: (1, pack) f32 | o_ref: (TR, pack) f32

    # bf16 cast done here (cheap VPU pack) so the wrapper never rewrites x in HBM.
    x = x_ref[...].astype(jnp.bfloat16)

    # Layers 1 & 2: bf16 MXU matmuls against block-diagonal weights, f32 accumulate;
    # bias add + ReLU stay f32 on the VPU.
    h1 = jnp.dot(x, w1_ref[...], preferred_element_type=jnp.float32)
    h1 = jnp.maximum(h1 + b1_ref[...], 0.0)
    h2 = jnp.dot(h1.astype(jnp.bfloat16), w2_ref[...],
                 preferred_element_type=jnp.float32)
    h2 = jnp.maximum(h2 + b2_ref[...], 0.0)

    # Head: block-diagonal (pack*H, pack) matmul -> one logit per packed row slot.
    logits = jnp.dot(h2.astype(jnp.bfloat16), w3_ref[...],
                     preferred_element_type=jnp.float32)
    o_ref[...] = jax.nn.sigmoid(logits + b3_ref[...]).astype(o_ref.dtype)


def policy_model_forward(x, w1, b1, w2, b2, w3, b3, *, tile_b=4096, pack=None):
    """x: (B, F) float. Returns (B, 1) float32 in [0, 1].

    Matches torch: sigmoid(relu(relu(x@W1+b1)@W2+b2)@W3+b3), weights stored as
    (in_features, out_features).
    """
    B, F = x.shape
    H = w1.shape[1]  # 64
    if pack is None:
        pack = _default_pack()

    # Pad the batch only when it is not a multiple of `pack` (at most pack-1 rows).
    b_pad = _round_up(B, pack)
    if b_pad != B:
        x = jnp.pad(x, ((0, b_pad - B), (0, 0)))
    rows = b_pad // pack          # packed rows
    kf = pack * F                 # packed layer-1 K
    kh = pack * H                 # packed hidden width

    # Free row-major view: `pack` consecutive batch rows per packed row.
    xp = x.reshape(rows, kf)

    # Block-diagonal packed weights (tiny, built once). bf16 for the MXU.
    eye = jnp.eye(pack, dtype=jnp.float32)
    w1bd = jnp.kron(eye, w1.astype(jnp.float32)).astype(jnp.bfloat16)           # (kf, kh)
    w2bd = jnp.kron(eye, w2.astype(jnp.float32)).astype(jnp.bfloat16)           # (kh, kh)
    w3bd = jnp.kron(eye, w3.reshape(H, 1).astype(jnp.float32)).astype(jnp.bfloat16)  # (kh, pack)
    b1t = jnp.tile(b1.reshape(1, H).astype(jnp.float32), (1, pack))             # (1, kh)
    b2t = jnp.tile(b2.reshape(1, H).astype(jnp.float32), (1, pack))             # (1, kh)
    b3t = jnp.broadcast_to(b3.reshape(1, 1).astype(jnp.float32), (1, pack))     # (1, pack)

    # ---- Tile size: as large as the (generation-aware) VMEM budget allows. ----
    x_itemsize = jnp.dtype(x.dtype).itemsize
    bytes_per_row = (
        2 * kf * x_itemsize       # x tile, double-buffered, native dtype
        + 2 * pack * 4            # out tile, double-buffered, f32
        + 3 * kh * 4              # f32 h1 / h2 + bf16 temporaries (generous)
    )
    weight_bytes = (kf * kh + kh * kh + kh * pack) * 2 + 3 * kh * 4
    vmem_cap = _vmem_capacity_bytes()
    budget = max(vmem_cap // 2 - weight_bytes, 1 << 20)
    max_rows_by_vmem = max(budget // bytes_per_row, 8)

    tile_rows = max(8, min(tile_b // pack, int(max_rows_by_vmem)))
    tile_rows = _round_up(tile_rows, 8)

    # Keep a few grid steps for large batches so the x-stream DMA pipelines and
    # (on v7x) both TensorCores get tiles.
    min_tile_rows = max(8, 2048 // pack)
    while tile_rows > min_tile_rows and pl.cdiv(rows, tile_rows) < 4:
        tile_rows = max(8, _round_up(tile_rows // 2, 8))

    # Never larger than the array (equality == "full dim" and is always legal);
    # partial last blocks are handled by Pallas, so no wrapper pad of x is needed.
    tile_rows = min(tile_rows, rows)

    num_tiles = pl.cdiv(rows, tile_rows)

    vmem_limit = int(weight_bytes + tile_rows * bytes_per_row + (8 << 20))
    vmem_limit = max(vmem_limit, 32 << 20)
    vmem_limit = min(vmem_limit, vmem_cap)

    out = pl.pallas_call(
        _mlp_kernel,
        out_shape=jax.ShapeDtypeStruct((rows, pack), jnp.float32),
        grid=(num_tiles,),
        in_specs=[
            pl.BlockSpec((tile_rows, kf), lambda i: (i, 0)),  # x: streams with grid
            pl.BlockSpec((kf, kh), lambda i: (0, 0)),         # W1 block-diag: resident
            pl.BlockSpec((1, kh), lambda i: (0, 0)),          # b1 tiled: resident
            pl.BlockSpec((kh, kh), lambda i: (0, 0)),         # W2 block-diag: resident
            pl.BlockSpec((1, kh), lambda i: (0, 0)),          # b2 tiled: resident
            pl.BlockSpec((kh, pack), lambda i: (0, 0)),       # W3 block-diag: resident
            pl.BlockSpec((1, pack), lambda i: (0, 0)),        # b3 tiled: resident
        ],
        out_specs=pl.BlockSpec((tile_rows, pack), lambda i: (i, 0)),
        compiler_params=pltpu.CompilerParams(
            dimension_semantics=("parallel",),   # v7x: shard batch tiles over 2 TCs
            vmem_limit_bytes=vmem_limit,
        ),
    )(xp, w1bd, b1t, w2bd, b2t, w3bd, b3t)

    # Row-major unpack (free) back to (B, 1).
    return out.reshape(b_pad, 1)[:B]


def init_params(key, feature_size, hidden=64):
    """Deterministic init mimicking torch.nn.Linear (uniform +/- 1/sqrt(fan_in))."""
    ks = jax.random.split(key, 6)

    def lin(kw, kb, fan_in, fan_out):
        bound = 1.0 / jnp.sqrt(fan_in)
        w = jax.random.uniform(kw, (fan_in, fan_out), jnp.float32, -bound, bound)
        b = jax.random.uniform(kb, (fan_out,), jnp.float32, -bound, bound)
        return w, b

    w1, b1 = lin(ks[0], ks[1], feature_size, hidden)
    w2, b2 = lin(ks[2], ks[3], hidden, hidden)
    w3, b3 = lin(ks[4], ks[5], hidden, 1)
    return w1, b1, w2, b2, w3, b3


def _reference(x, w1, b1, w2, b2, w3, b3):
    h1 = jax.nn.relu(x @ w1 + b1)
    h2 = jax.nn.relu(h1 @ w2 + b2)
    return jax.nn.sigmoid(h2 @ w3 + b3)


if __name__ == "__main__":
    key = jax.random.PRNGKey(0)
    k_x1, k_x2, k_p = jax.random.split(key, 3)

    feature_size = 32
    params = init_params(k_p, feature_size)

    # Case 1: tiny batch (single partial tile).
    x1 = jax.random.normal(k_x1, (8, feature_size), dtype=jnp.float32)
    out1 = jax.block_until_ready(policy_model_forward(x1, *params))
    ref1 = _reference(x1, *params)
    assert out1.shape == (8, 1)
    # bf16 matmul operands -> relaxed tolerance vs the f32 reference.
    assert jnp.allclose(out1, ref1, atol=2e-2, rtol=2e-2)

    # Case 2: non-multiple batch with several grid tiles (partial last block + pipeline).
    x2 = jax.random.normal(k_x2, (300, feature_size), dtype=jnp.float32)
    out2 = jax.block_until_ready(policy_model_forward(x2, *params, tile_b=128))
    ref2 = _reference(x2, *params)
    assert out2.shape == (300, 1)
    assert jnp.allclose(out2, ref2, atol=2e-2, rtol=2e-2)

    # Case 3: predict()-style single state (batch=1, padded up to `pack`).
    x3 = x2[:1]
    out3 = jax.block_until_ready(policy_model_forward(x3, *params))
    assert out3.shape == (1, 1)
    assert jnp.allclose(out3, _reference(x3, *params), atol=2e-2, rtol=2e-2)

    print("KERNEL_OK")
</pallas_src>

<mosaic_0001>
module attributes {stable_mosaic.version = 11 : i64} {
  func.func @_mlp_kernel(%arg0: i32, %arg1: memref<4x64xf32, #tpu.memory_space<vmem>>, %arg2: memref<64x128xbf16, #tpu.memory_space<vmem>>, %arg3: memref<1x128xf32, #tpu.memory_space<vmem>>, %arg4: memref<128x128xbf16, #tpu.memory_space<vmem>>, %arg5: memref<1x128xf32, #tpu.memory_space<vmem>>, %arg6: memref<128x2xbf16, #tpu.memory_space<vmem>>, %arg7: memref<1x2xf32, #tpu.memory_space<vmem>>, %arg8: memref<4x2xf32, #tpu.memory_space<vmem>>) attributes {dimension_semantics = [#tpu.dimension_semantics<parallel>], iteration_bounds = array<i64: 1>, scalar_prefetch = 0 : i64, scratch_operands = 0 : i64, tpu.core_type = #tpu.core_type<tc>, window_params = [{transform_indices = @transform_0, window_bounds = array<i64: 4, 64>}, {pipeline_mode = #tpu.pipeline_mode<synchronous>, transform_indices = @transform_1, window_bounds = array<i64: 64, 128>}, {pipeline_mode = #tpu.pipeline_mode<synchronous>, transform_indices = @transform_2, window_bounds = array<i64: 1, 128>}, {pipeline_mode = #tpu.pipeline_mode<synchronous>, transform_indices = @transform_3, window_bounds = array<i64: 128, 128>}, {pipeline_mode = #tpu.pipeline_mode<synchronous>, transform_indices = @transform_4, window_bounds = array<i64: 1, 128>}, {pipeline_mode = #tpu.pipeline_mode<synchronous>, transform_indices = @transform_5, window_bounds = array<i64: 128, 2>}, {pipeline_mode = #tpu.pipeline_mode<synchronous>, transform_indices = @transform_6, window_bounds = array<i64: 1, 2>}, {transform_indices = @transform_7, window_bounds = array<i64: 4, 2>}]} {
    %c0 = arith.constant 0 : index
    %c0_0 = arith.constant 0 : index
    %0 = vector.load %arg1[%c0, %c0_0] : memref<4x64xf32, #tpu.memory_space<vmem>>, vector<4x64xf32>
    %1 = arith.truncf %0 : vector<4x64xf32> to vector<4x64xbf16>
    %c0_1 = arith.constant 0 : index
    %c0_2 = arith.constant 0 : index
    %2 = vector.load %arg2[%c0_1, %c0_2] : memref<64x128xbf16, #tpu.memory_space<vmem>>, vector<64x128xbf16>
    %cst = arith.constant dense<0.000000e+00> : vector<4x128xf32>
    %3 = tpu.matmul %1, %2, %cst {dimension_numbers = #tpu.dot_dimension_numbers<[1], [0], [0], [1], [0, 0, 1, 1], [], []>} : vector<4x64xbf16>, vector<64x128xbf16>, vector<4x128xf32> -> vector<4x128xf32>
    %c0_3 = arith.constant 0 : index
    %c0_4 = arith.constant 0 : index
    %4 = vector.load %arg3[%c0_3, %c0_4] : memref<1x128xf32, #tpu.memory_space<vmem>>, vector<1x128xf32>
    %5 = vector.broadcast %4 : vector<1x128xf32> to vector<4x128xf32>
    %6 = arith.addf %3, %5 : vector<4x128xf32>
    %cst_5 = arith.constant 0.000000e+00 : f32
    %7 = vector.broadcast %cst_5 : f32 to vector<4x128xf32>
    %8 = arith.maximumf %6, %7 : vector<4x128xf32>
    %9 = arith.truncf %8 : vector<4x128xf32> to vector<4x128xbf16>
    %c0_6 = arith.constant 0 : index
    %c0_7 = arith.constant 0 : index
    %10 = vector.load %arg4[%c0_6, %c0_7] : memref<128x128xbf16, #tpu.memory_space<vmem>>, vector<128x128xbf16>
    %cst_8 = arith.constant dense<0.000000e+00> : vector<4x128xf32>
    %11 = tpu.matmul %9, %10, %cst_8 {dimension_numbers = #tpu.dot_dimension_numbers<[1], [0], [0], [1], [0, 0, 1, 1], [], []>} : vector<4x128xbf16>, vector<128x128xbf16>, vector<4x128xf32> -> vector<4x128xf32>
    %c0_9 = arith.constant 0 : index
    %c0_10 = arith.constant 0 : index
    %12 = vector.load %arg5[%c0_9, %c0_10] : memref<1x128xf32, #tpu.memory_space<vmem>>, vector<1x128xf32>
    %13 = vector.broadcast %12 : vector<1x128xf32> to vector<4x128xf32>
    %14 = arith.addf %11, %13 : vector<4x128xf32>
    %cst_11 = arith.constant 0.000000e+00 : f32
    %15 = vector.broadcast %cst_11 : f32 to vector<4x128xf32>
    %16 = arith.maximumf %14, %15 : vector<4x128xf32>
    %17 = arith.truncf %16 : vector<4x128xf32> to vector<4x128xbf16>
    %c0_12 = arith.constant 0 : index
    %c0_13 = arith.constant 0 : index
    %18 = vector.load %arg6[%c0_12, %c0_13] : memref<128x2xbf16, #tpu.memory_space<vmem>>, vector<128x2xbf16>
    %cst_14 = arith.constant dense<0.000000e+00> : vector<4x2xf32>
    %19 = tpu.matmul %17, %18, %cst_14 {dimension_numbers = #tpu.dot_dimension_numbers<[1], [0], [0], [1], [0, 0, 1, 1], [], []>} : vector<4x128xbf16>, vector<128x2xbf16>, vector<4x2xf32> -> vector<4x2xf32>
    %c0_15 = arith.constant 0 : index
    %c0_16 = arith.constant 0 : index
    %20 = vector.load %arg7[%c0_15, %c0_16] : memref<1x2xf32, #tpu.memory_space<vmem>>, vector<1x2xf32>
    %21 = vector.broadcast %20 : vector<1x2xf32> to vector<4x2xf32>
    %22 = arith.addf %19, %21 : vector<4x2xf32>
    %23 = arith.negf %22 : vector<4x2xf32>
    %24 = math.exp %23 : vector<4x2xf32>
    %cst_17 = arith.constant 1.000000e+00 : f32
    %25 = vector.broadcast %cst_17 : f32 to vector<4x2xf32>
    %26 = arith.addf %25, %24 : vector<4x2xf32>
    %27 = arith.divf %25, %26 : vector<4x2xf32>
    %c0_18 = arith.constant 0 : index
    %c0_19 = arith.constant 0 : index
    %28 = vector.load %arg8[%c0_18, %c0_19] : memref<4x2xf32, #tpu.memory_space<vmem>>, vector<4x2xf32>
    tpu.vector_store %arg8[%c0_18, %c0_19], %27 {strides = array<i32>} : memref<4x2xf32, #tpu.memory_space<vmem>>, vector<4x2xf32>,
    return
  }
  func.func @transform_0(%arg0: i32) -> (i32, i32) {
    %c0_i32 = arith.constant 0 : i32
    %c0_i32_0 = arith.constant 0 : i32
    return %arg0, %c0_i32 : i32, i32
  }
  func.func @transform_1(%arg0: i32) -> (i32, i32) {
    %c0_i32 = arith.constant 0 : i32
    %c0_i32_0 = arith.constant 0 : i32
    %c0_i32_1 = arith.constant 0 : i32
    return %c0_i32, %c0_i32_0 : i32, i32
  }
  func.func @transform_2(%arg0: i32) -> (i32, i32) {
    %c0_i32 = arith.constant 0 : i32
    %c0_i32_0 = arith.constant 0 : i32
    %c0_i32_1 = arith.constant 0 : i32
    return %c0_i32, %c0_i32_0 : i32, i32
  }
  func.func @transform_3(%arg0: i32) -> (i32, i32) {
    %c0_i32 = arith.constant 0 : i32
    %c0_i32_0 = arith.constant 0 : i32
    %c0_i32_1 = arith.constant 0 : i32
    return %c0_i32, %c0_i32_0 : i32, i32
  }
  func.func @transform_4(%arg0: i32) -> (i32, i32) {
    %c0_i32 = arith.constant 0 : i32
    %c0_i32_0 = arith.constant 0 : i32
    %c0_i32_1 = arith.constant 0 : i32
    return %c0_i32, %c0_i32_0 : i32, i32
  }
  func.func @transform_5(%arg0: i32) -> (i32, i32) {
    %c0_i32 = arith.constant 0 : i32
    %c0_i32_0 = arith.constant 0 : i32
    %c0_i32_1 = arith.constant 0 : i32
    return %c0_i32, %c0_i32_0 : i32, i32
  }
  func.func @transform_6(%arg0: i32) -> (i32, i32) {
    %c0_i32 = arith.constant 0 : i32
    %c0_i32_0 = arith.constant 0 : i32
    %c0_i32_1 = arith.constant 0 : i32
    return %c0_i32, %c0_i32_0 : i32, i32
  }
  func.func @transform_7(%arg0: i32) -> (i32, i32) {
    %c0_i32 = arith.constant 0 : i32
    %c0_i32_0 = arith.constant 0 : i32
    return %arg0, %c0_i32 : i32, i32
  }
}

</mosaic_0001>

<llo_original>
// kernel: tpu_custom_call.1
$region0: #{tpu_custom_call.1}
  #allocation0 [shape = 'u32[]', space=smem, size = 0x4, offset = 0x4, fixed_abs, tag = 'smem constant byte address 0x4 - core index']
  #allocation1 [shape = 'u32[144,128]{1,0:T(1,128)}', space=vmem, size = 0x12000, scoped, tag = 'internal scratch']
  %s0 = inlined_call_operand.vmem [shape: f32[4,64], index: 0, kind: input, shape index: {}]
  %s1 = inlined_call_operand.hbm [shape: bf16[64,128], index: 1, kind: input, shape index: {}]
  %s2 = inlined_call_operand.vmem [shape: f32[1,128], index: 2, kind: input, shape index: {}]
  %s3 = inlined_call_operand.vmem [shape: bf16[128,128], index: 3, kind: input, shape index: {}]
  %s4 = inlined_call_operand.vmem [shape: f32[1,128], index: 4, kind: input, shape index: {}]
  %s5 = inlined_call_operand.vmem [shape: bf16[128,2], index: 5, kind: input, shape index: {}]
  %s6 = inlined_call_operand.vmem [shape: f32[1,2], index: 6, kind: input, shape index: {}]
  %s7 = inlined_call_operand.vmem [shape: f32[4,2], index: 7, kind: output, shape index: {}]
  %s8 = sld [smem:[#allocation0]]
  $region42: #{tpu_custom_call.1} parent=0
    _
  %s10 = ssub.s32 1, %s8
  %s11 = scalar_select 0, %s10, %s8
  $region1: #{tpu_custom_call.1} parent=0
    #allocation2 [shape = 'u8[16384]{0}', space=vmem, size = 0x4000, scoped, tag = 'input window, operand 1, single buffered']
    #allocation3 [shape = 's32[1]{0}', space=sflag, size = 0x4, scoped, tag = 'scoped memory for tpu_custom_call.1']
    %12 = vsyncpa [#allocation3], 0
    // Predicated region
    $region2: #{tpu_custom_call.1} parent=1 // pred_check
      _
    $region3: #{tpu_custom_call.1} parent=1 // pred_check_branch
      %14 = sbr.rel (0) target = $region5
    $region4: #{tpu_custom_call.1} parent=1 // pred_region
      _
    $region5: #{tpu_custom_call.1} parent=1 // pred_fallthru
      _
    // Predicated region
    $region6: #{tpu_custom_call.1} parent=1 // pred_check
      _
    $region7: #{tpu_custom_call.1} parent=1 // pred_check_branch
      %16 = sbr.rel (0) target = $region9
    $region8: #{tpu_custom_call.1} parent=1 // pred_region
      %s18 = ssub.s32 512, 512
      %19 = vsyncadd [#allocation3], %s18
      %s20 = sshll.u32 [#allocation2], 4
      %s21 = int_to_ptr.vmem [resolvable:$true] %s20
      %26 = dma.hbm_to_vmem [thread:$0]  %s1, 512, %s21, [#allocation3], 64, 64, 4
    $region9: #{tpu_custom_call.1} parent=1 // pred_fallthru
      _
    // Predicated region
    $region10: #{tpu_custom_call.1} parent=1 // pred_check
      _
    $region11: #{tpu_custom_call.1} parent=1 // pred_check_branch
      %28 = sbr.rel (0) target = $region13
    $region12: #{tpu_custom_call.1} parent=1 // pred_region
      _
    $region13: #{tpu_custom_call.1} parent=1 // pred_fallthru
      _
    // Predicated region
    $region14: #{tpu_custom_call.1} parent=1 // pred_check
      _
    $region15: #{tpu_custom_call.1} parent=1 // pred_check_branch
      %30 = sbr.rel (0) target = $region17
    $region16: #{tpu_custom_call.1} parent=1 // pred_region
      _
    $region17: #{tpu_custom_call.1} parent=1 // pred_fallthru
      _
    // Predicated region
    $region18: #{tpu_custom_call.1} parent=1 // pred_check
      _
    $region19: #{tpu_custom_call.1} parent=1 // pred_check_branch
      %32 = sbr.rel (0) target = $region21
    $region20: #{tpu_custom_call.1} parent=1 // pred_region
      _
    $region21: #{tpu_custom_call.1} parent=1 // pred_fallthru
      _
    // Predicated region
    $region22: #{tpu_custom_call.1} parent=1 // pred_check
      _
    $region23: #{tpu_custom_call.1} parent=1 // pred_check_branch
      %34 = sbr.rel (0) target = $region25
    $region24: #{tpu_custom_call.1} parent=1 // pred_region
      _
    $region25: #{tpu_custom_call.1} parent=1 // pred_fallthru
      _
    // Predicated region
    $region26: #{tpu_custom_call.1} parent=1 // pred_check
      _
    $region27: #{tpu_custom_call.1} parent=1 // pred_check_branch
      %36 = sbr.rel (0) target = $region29
    $region28: #{tpu_custom_call.1} parent=1 // pred_region
      _
    $region29: #{tpu_custom_call.1} parent=1 // pred_fallthru
      _
    // Predicated region
    $region30: #{tpu_custom_call.1} parent=1 // pred_check
      _
    $region31: #{tpu_custom_call.1} parent=1 // pred_check_branch
      %38 = sbr.rel (0) target = $region33
    $region32: #{tpu_custom_call.1} parent=1 // pred_region
      %39 = dma.done [#allocation3], 512
    $region33: #{tpu_custom_call.1} parent=1 // pred_fallthru
      _
    %v41 = vld [vmem:[%s0] sm:$0xf]
    %v42 = vpack.c.bf16 %v41, %v41
    %v43 = vld [vmem:[#allocation2] sm:$0xf]
    %v44 = vld [vmem:[#allocation2 + $0x4] sm:$0xf]
    %v45 = vld [vmem:[#allocation2 + $0x8] sm:$0xf]
    %v46 = vld [vmem:[#allocation2 + $0xc] sm:$0xf]
    %v47 = vld [vmem:[#allocation2 + $0x10] sm:$0xf]
    %v48 = vld [vmem:[#allocation2 + $0x14] sm:$0xf]
    %v49 = vld [vmem:[#allocation2 + $0x18] sm:$0xf]
    %v50 = vld [vmem:[#allocation2 + $0x1c] sm:$0xf]
    %v51 = vld [vmem:[%s2] sm:$0x1]
    %v53 = vlaneseq
    %v54 = vshrl.u32 %v53, 7
    %v55 = vsub.s32 0, %v54
    %v56 = vrot.slane %v51, %v55
    %v66 = vunpack.c.l.b16 %v43
    %v67 = vunpack.c.l.b16 %v44
    %v68 = vunpack.c.l.b16 %v45
    %v69 = vunpack.c.l.b16 %v46
    %v70 = vunpack.c.l.b16 %v47
    %v71 = vunpack.c.l.b16 %v48
    %v72 = vunpack.c.l.b16 %v49
    %v73 = vunpack.c.l.b16 %v50
    %v74 = vpack.c.b16 %v67, %v66
    %v75 = vpack.c.b16 %v69, %v68
    %v76 = vpack.c.b16 %v71, %v70
    %v77 = vpack.c.b16 %v73, %v72
    %vm82 = vcmask 523264
    %v84 = vsel %vm82, %v42, 0
    %86 = vmatprep.subr.bf16.mxu0 0
    %87 = vmatpush1.bf16.msra.mxu0 %v74
    %88 = vmatprep.subr.bf16.mxu0 0
    %89 = vmatpush1.bf16.msra.mxu0 %v75
    %90 = vmatprep.subr.bf16.mxu0 0
    %91 = vmatpush1.bf16.msra.mxu0 %v76
    %92 = vmatprep.subr.bf16.mxu0 0
    %93 = vmatpush1.bf16.msra.mxu0 %v77
    %94 = vmatprep.subr.bf16.mxu0 0
    %95 = vmatpush1.bf16.msra.mxu0 0
    %96 = vmatprep.subr.bf16.mxu0 0
    %97 = vmatpush1.bf16.msra.mxu0 0
    %98 = vmatprep.subr.bf16.mxu0 0
    %99 = vmatpush1.bf16.msra.mxu0 0
    %100 = vmatprep.subr.bf16.mxu0 0
    %101 = vmatpush1.bf16.msra.mxu0 0
    %102 = vmatprep.subr.bf16.mxu0 0
    %103 = vmatpush1.bf16.msra.mxu0 0
    %104 = vmatprep.subr.bf16.mxu0 0
    %105 = vmatpush1.bf16.msra.mxu0 0
    %106 = vmatprep.subr.bf16.mxu0 0
    %107 = vmatpush1.bf16.msra.mxu0 0
    %108 = vmatprep.subr.bf16.mxu0 0
    %109 = vmatpush1.bf16.msra.mxu0 0
    %110 = vmatprep.subr.bf16.mxu0 0
    %111 = vmatpush1.bf16.msra.mxu0 0
    %112 = vmatprep.subr.bf16.mxu0 0
    %113 = vmatpush1.bf16.msra.mxu0 0
    %114 = vmatprep.subr.bf16.mxu0 0
    %115 = vmatpush1.bf16.msra.mxu0 0
    %116 = vmatprep.subr.bf16.mxu0 0
    %117 = vmatpush1.bf16.msra.mxu0 0
    %118 = vmatprep.mubr.bf16.mxu0 0
    %119 = vmatmul.mubr.bf16.gmra.mrb[0].mxu0 %v84
    %v120 = vpop.f32.mrb[0].mxu0
    %v121 = vadd.f32 %v56, %v120
    %v122 = vpop.f32.mrb[0].mxu0
    %v123 = vpop.f32.mrb[0].mxu0
    %v124 = vpop.f32.mrb[0].mxu0
    %125 = vdwg.mxu0
    %v126 = vmax.f32 %v121, 0.0
    %v127 = vpack.c.bf16 %v126, %v126
    %v128 = vld [vmem:[%s3] sm:$0xf]
    %v129 = vld [vmem:[%s3 + $0x4] sm:$0xf]
    %v130 = vld [vmem:[%s3 + $0x8] sm:$0xf]
    %v131 = vld [vmem:[%s3 + $0xc] sm:$0xf]
    %v132 = vld [vmem:[%s3 + $0x10] sm:$0xf]
    %v133 = vld [vmem:[%s3 + $0x14] sm:$0xf]
    %v134 = vld [vmem:[%s3 + $0x18] sm:$0xf]
    %v135 = vld [vmem:[%s3 + $0x1c] sm:$0xf]
    %v136 = vld [vmem:[%s3 + $0x20] sm:$0xf]
    %v137 = vld [vmem:[%s3 + $0x24] sm:$0xf]
    %v138 = vld [vmem:[%s3 + $0x28] sm:$0xf]
    %v139 = vld [vmem:[%s3 + $0x2c] sm:$0xf]
    %v140 = vld [vmem:[%s3 + $0x30] sm:$0xf]
    %v141 = vld [vmem:[%s3 + $0x34] sm:$0xf]
    %v142 = vld [vmem:[%s3 + $0x38] sm:$0xf]
    %v143 = vld [vmem:[%s3 + $0x3c] sm:$0xf]
    %v144 = vld [vmem:[%s4] sm:$0x1]
    %v146 = vlaneseq
    %v147 = vshrl.u32 %v146, 7
    %v148 = vsub.s32 0, %v147
    %v149 = vrot.slane %v144, %v148
    %v167 = vunpack.c.l.b16 %v128
    %v168 = vunpack.c.l.b16 %v129
    %v169 = vunpack.c.l.b16 %v130
    %v170 = vunpack.c.l.b16 %v131
    %v171 = vunpack.c.l.b16 %v132
    %v172 = vunpack.c.l.b16 %v133
    %v173 = vunpack.c.l.b16 %v134
    %v174 = vunpack.c.l.b16 %v135
    %v175 = vunpack.c.l.b16 %v136
    %v176 = vunpack.c.l.b16 %v137
    %v177 = vunpack.c.l.b16 %v138
    %v178 = vunpack.c.l.b16 %v139
    %v179 = vunpack.c.l.b16 %v140
    %v180 = vunpack.c.l.b16 %v141
    %v181 = vunpack.c.l.b16 %v142
    %v182 = vunpack.c.l.b16 %v143
    %v183 = vpack.c.b16 %v168, %v167
    %v184 = vpack.c.b16 %v170, %v169
    %v185 = vpack.c.b16 %v172, %v171
    %v186 = vpack.c.b16 %v174, %v173
    %v187 = vpack.c.b16 %v176, %v175
    %v188 = vpack.c.b16 %v178, %v177
    %v189 = vpack.c.b16 %v180, %v179
    %v190 = vpack.c.b16 %v182, %v181
    %199 = vmatprep.subr.bf16.mxu0 0
    %200 = vmatpush1.bf16.msra.mxu0 %v183
    %201 = vmatprep.subr.bf16.mxu0 0
    %202 = vmatpush1.bf16.msra.mxu0 %v184
    %203 = vmatprep.subr.bf16.mxu0 0
    %204 = vmatpush1.bf16.msra.mxu0 %v185
    %205 = vmatprep.subr.bf16.mxu0 0
    %206 = vmatpush1.bf16.msra.mxu0 %v186
    %207 = vmatprep.subr.bf16.mxu0 0
    %208 = vmatpush1.bf16.msra.mxu0 %v187
    %209 = vmatprep.subr.bf16.mxu0 0
    %210 = vmatpush1.bf16.msra.mxu0 %v188
    %211 = vmatprep.subr.bf16.mxu0 0
    %212 = vmatpush1.bf16.msra.mxu0 %v189
    %213 = vmatprep.subr.bf16.mxu0 0
    %214 = vmatpush1.bf16.msra.mxu0 %v190
    %215 = vmatprep.subr.bf16.mxu0 0
    %216 = vmatpush1.bf16.msra.mxu0 0
    %217 = vmatprep.subr.bf16.mxu0 0
    %218 = vmatpush1.bf16.msra.mxu0 0
    %219 = vmatprep.subr.bf16.mxu0 0
    %220 = vmatpush1.bf16.msra.mxu0 0
    %221 = vmatprep.subr.bf16.mxu0 0
    %222 = vmatpush1.bf16.msra.mxu0 0
    %223 = vmatprep.subr.bf16.mxu0 0
    %224 = vmatpush1.bf16.msra.mxu0 0
    %225 = vmatprep.subr.bf16.mxu0 0
    %226 = vmatpush1.bf16.msra.mxu0 0
    %227 = vmatprep.subr.bf16.mxu0 0
    %228 = vmatpush1.bf16.msra.mxu0 0
    %229 = vmatprep.subr.bf16.mxu0 0
    %230 = vmatpush1.bf16.msra.mxu0 0
    %231 = vmatprep.mubr.bf16.mxu0 0
    %232 = vmatmul.mubr.bf16.gmra.mrb[0].mxu0 %v127
    %v233 = vpop.f32.mrb[0].mxu0
    %v234 = vadd.f32 %v149, %v233
    %v235 = vpop.f32.mrb[0].mxu0
    %v236 = vpop.f32.mrb[0].mxu0
    %v237 = vpop.f32.mrb[0].mxu0
    %238 = vdwg.mxu0
    %v239 = vmax.f32 %v234, 0.0
    %v240 = vpack.c.bf16 %v239, %v239
    %v241 = vld [vmem:[%s5] sm:$0xf]
    %v242 = vld [vmem:[%s5 + $0x4] sm:$0xf]
    %v243 = vld [vmem:[%s5 + $0x8] sm:$0xf]
    %v244 = vld [vmem:[%s5 + $0xc] sm:$0xf]
    %v245 = vld [vmem:[%s5 + $0x10] sm:$0xf]
    %v246 = vld [vmem:[%s5 + $0x14] sm:$0xf]
    %v247 = vld [vmem:[%s5 + $0x18] sm:$0xf]
    %v248 = vld [vmem:[%s5 + $0x1c] sm:$0xf]
    %v249 = vld [vmem:[%s5 + $0x20] sm:$0xf]
    %v250 = vld [vmem:[%s5 + $0x24] sm:$0xf]
    %v251 = vld [vmem:[%s5 + $0x28] sm:$0xf]
    %v252 = vld [vmem:[%s5 + $0x2c] sm:$0xf]
    %v253 = vld [vmem:[%s5 + $0x30] sm:$0xf]
    %v254 = vld [vmem:[%s5 + $0x34] sm:$0xf]
    %v255 = vld [vmem:[%s5 + $0x38] sm:$0xf]
    %v256 = vld [vmem:[%s5 + $0x3c] sm:$0xf]
    %v257 = vld [vmem:[%s6] sm:$0x1]
    %v259 = vlaneseq
    %v260 = vshrl.u32 %v259, 7
    %v261 = vsub.s32 0, %v260
    %v262 = vrot.slane %v257, %v261
    %v280 = vunpack.c.l.b16 %v241
    %v281 = vunpack.c.l.b16 %v242
    %v282 = vunpack.c.l.b16 %v243
    %v283 = vunpack.c.l.b16 %v244
    %v284 = vunpack.c.l.b16 %v245
    %v285 = vunpack.c.l.b16 %v246
    %v286 = vunpack.c.l.b16 %v247
    %v287 = vunpack.c.l.b16 %v248
    %v288 = vunpack.c.l.b16 %v249
    %v289 = vunpack.c.l.b16 %v250
    %v290 = vunpack.c.l.b16 %v251
    %v291 = vunpack.c.l.b16 %v252
    %v292 = vunpack.c.l.b16 %v253
    %v293 = vunpack.c.l.b16 %v254
    %v294 = vunpack.c.l.b16 %v255
    %v295 = vunpack.c.l.b16 %v256
    %v296 = vpack.c.b16 %v281, %v280
    %v297 = vpack.c.b16 %v283, %v282
    %v298 = vpack.c.b16 %v285, %v284
    %v299 = vpack.c.b16 %v287, %v286
    %v300 = vpack.c.b16 %v289, %v288
    %v301 = vpack.c.b16 %v291, %v290
    %v302 = vpack.c.b16 %v293, %v292
    %v303 = vpack.c.b16 %v295, %v294
    %312 = vmatprep.subr.bf16.mxu0 0
    %313 = vmatpush1.bf16.msra.mxu0 %v296
    %314 = vmatprep.subr.bf16.mxu0 0
    %315 = vmatpush1.bf16.msra.mxu0 %v297
    %316 = vmatprep.subr.bf16.mxu0 0
    %317 = vmatpush1.bf16.msra.mxu0 %v298
    %318 = vmatprep.subr.bf16.mxu0 0
    %319 = vmatpush1.bf16.msra.mxu0 %v299
    %320 = vmatprep.subr.bf16.mxu0 0
    %321 = vmatpush1.bf16.msra.mxu0 %v300
    %322 = vmatprep.subr.bf16.mxu0 0
    %323 = vmatpush1.bf16.msra.mxu0 %v301
    %324 = vmatprep.subr.bf16.mxu0 0
    %325 = vmatpush1.bf16.msra.mxu0 %v302
    %326 = vmatprep.subr.bf16.mxu0 0
    %327 = vmatpush1.bf16.msra.mxu0 %v303
    %328 = vmatprep.subr.bf16.mxu0 0
    %329 = vmatpush1.bf16.msra.mxu0 0
    %330 = vmatprep.subr.bf16.mxu0 0
    %331 = vmatpush1.bf16.msra.mxu0 0
    %332 = vmatprep.subr.bf16.mxu0 0
    %333 = vmatpush1.bf16.msra.mxu0 0
    %334 = vmatprep.subr.bf16.mxu0 0
    %335 = vmatpush1.bf16.msra.mxu0 0
    %336 = vmatprep.subr.bf16.mxu0 0
    %337 = vmatpush1.bf16.msra.mxu0 0
    %338 = vmatprep.subr.bf16.mxu0 0
    %339 = vmatpush1.bf16.msra.mxu0 0
    %340 = vmatprep.subr.bf16.mxu0 0
    %341 = vmatpush1.bf16.msra.mxu0 0
    %342 = vmatprep.subr.bf16.mxu0 0
    %343 = vmatpush1.bf16.msra.mxu0 0
    %344 = vmatprep.mubr.bf16.mxu0 0
    %345 = vmatmul.mubr.bf16.gmra.mrb[0].mxu0 %v240
    %v346 = vpop.f32.mrb[0].mxu0
    %v347 = vadd.f32 %v262, %v346
    %v348 = vpop.f32.mrb[0].mxu0
    %v349 = vpop.f32.mrb[0].mxu0
    %v350 = vpop.f32.mrb[0].mxu0
    %351 = vdwg.mxu0
    %v352 = vxor.u32 %v347, 2147483648
    %v353 = vmul.f32 %v352, 1.442695
    %v354 = vpow.pop %v353
    %v355 = vadd.f32 %v354, 1.0
    %v356 = vrcp.pop %v355
    %v357 = vmul.f32 1.0, %v356
    %vm358 = vcmask 11264
    %359 = vst.msk [vmem:[%s7] sm:$0xf] %vm358, %v357
    // Predicated region
    $region34: #{tpu_custom_call.1} parent=1 // pred_check
      _
    $region35: #{tpu_custom_call.1} parent=1 // pred_check_branch
      %361 = sbr.rel (0) target = $region37
    $region36: #{tpu_custom_call.1} parent=1 // pred_region
      _
    $region37: #{tpu_custom_call.1} parent=1 // pred_fallthru
      _
    // Predicated region
    $region38: #{tpu_custom_call.1} parent=1 // pred_check
      _
    $region39: #{tpu_custom_call.1} parent=1 // pred_check_branch
      %363 = sbr.rel (0) target = $region41
    $region40: #{tpu_custom_call.1} parent=1 // pred_region
      _
    $region41: #{tpu_custom_call.1} parent=1 // pred_fallthru
      _
    %364 = vsyncpa [#allocation3], 1

</llo_original>
